<compile_context>
chip_gen: v7x
topology: tpu7x:2x2x1
jax: 0.10.0
libtpu: 0.0.40
codegen_flags: <defaults>
</compile_context>

<pallas_src>
import functools
import math

import jax
import jax.numpy as jnp
from jax.experimental import pallas as pl
from jax.experimental.pallas import tpu as pltpu

_GN_EPS = 1e-5


# --------------------------------------------------------------------------
# Elementwise helpers (exact-erf GELU, usable inside the kernel).
# --------------------------------------------------------------------------
def _erf(x):
    # Abramowitz & Stegun 7.1.26 rational approximation, |err| < 1.5e-7.
    p = 0.3275911
    a1, a2, a3, a4, a5 = (0.254829592, -0.284496736, 1.421413741,
                          -1.453152027, 1.061405429)
    s = jnp.where(x >= 0.0, 1.0, -1.0)
    ax = jnp.abs(x)
    u = 1.0 / (1.0 + p * ax)
    poly = ((((a5 * u + a4) * u + a3) * u + a2) * u + a1) * u
    return s * (1.0 - poly * jnp.exp(-ax * ax))


def _gelu(x):
    # exact (erf-based) GELU, matching torch.nn.GELU() default
    return 0.5 * x * (1.0 + _erf(x * 0.7071067811865476))


# --------------------------------------------------------------------------
# The fused Pallas kernel: one batch element per grid step.
# Layouts: x (Cin, H*W), conv weights (Cout, 9*Cin), gamma/beta (C, 1),
#          tap masks (9, 1, H*W), output (Cout, H*W)  -> lane dim = H*W.
# --------------------------------------------------------------------------
def _make_double_conv_kernel(H, W, residual, matmul_dtype):
    del H  # only W is needed for the lane-shift amounts

    def kernel(x_ref, mask_ref, w1_ref, g1_ref, b1_ref,
               w2_ref, g2_ref, b2_ref, o_ref):

        masks = mask_ref[...]                                 # (9, 1, HW)

        def conv3x3(h_md, w_ref):
            # h_md: (C, HW) in matmul_dtype ; w_ref: (Cout, 9*C).  Build the
            # im2col RHS from 9 lane-shifted (and boundary-masked) copies,
            # then do ONE MXU matmul with K = 9*C and N = H*W (lane-dense).
            cols = []
            k = 0
            for dy in (-1, 0, 1):
                for dx in (-1, 0, 1):
                    s = dy * W + dx
                    if s == 0:
                        cols.append(h_md)                     # center tap
                    else:
                        # shifted[:, i] = h[:, (i + s) mod HW]; wrapped pixels
                        # are exactly the out-of-image taps -> zeroed by mask.
                        shifted = jnp.concatenate(
                            [h_md[:, s:], h_md[:, :s]], axis=1)
                        cols.append(shifted * masks[k])       # (1, HW) mask
                    k += 1
            im2col = jnp.concatenate(cols, axis=0)            # (9*C, HW)
            return jnp.dot(w_ref[...], im2col,
                           preferred_element_type=jnp.float32)  # (Cout, HW)

        def groupnorm1(h, g_ref, b_ref):
            # GroupNorm(num_groups=1): stats over the whole (C, H, W) plane,
            # one pass; scale/shift folded into a single FMA over the plane.
            n = h.shape[0] * h.shape[1]
            s1 = jnp.sum(h)
            s2 = jnp.sum(h * h)
            mu = s1 * (1.0 / n)
            var = s2 * (1.0 / n) - mu * mu
            scale = jax.lax.rsqrt(var + _GN_EPS) * g_ref[...]    # (C, 1)
            shift = b_ref[...] - mu * scale                      # (C, 1)
            return h * scale + shift

        x_md = x_ref[...]                                     # (Cin, HW)

        h = conv3x3(x_md, w1_ref)                             # f32
        h = _gelu(groupnorm1(h, g1_ref, b1_ref))
        h = conv3x3(h.astype(matmul_dtype), w2_ref)           # f32
        h = groupnorm1(h, g2_ref, b2_ref)
        if residual:
            h = _gelu(x_md.astype(jnp.float32) + h)
        o_ref[...] = h.astype(o_ref.dtype)

    return kernel


# --------------------------------------------------------------------------
# Wrapper glue: free reshapes (no transposes), weight flattening, tap masks.
# --------------------------------------------------------------------------
def _tap_masks(H, W, dtype):
    yy = jnp.arange(H).reshape(H, 1)
    xx = jnp.arange(W).reshape(1, W)
    masks = []
    for dy in (-1, 0, 1):
        for dx in (-1, 0, 1):
            ok = ((yy + dy >= 0) & (yy + dy < H) &
                  (xx + dx >= 0) & (xx + dx < W))
            masks.append(ok.reshape(1, H * W))
    return jnp.stack(masks, axis=0).astype(dtype)             # (9, 1, H*W)


def _conv_weight_matrix(w, dtype):
    # torch layout (Cout, Cin, 3, 3) -> (Cout, 9*Cin), tap-major then cin,
    # matching the im2col row order built inside the kernel.
    cout, cin = w.shape[0], w.shape[1]
    return jnp.transpose(w, (0, 2, 3, 1)).reshape(cout, 9 * cin).astype(dtype)


@functools.partial(jax.jit, static_argnames=("residual", "matmul_dtype"))
def double_conv_forward(x, params, *, residual=False,
                        matmul_dtype=jnp.bfloat16):
    B, Cin, H, W = x.shape
    HW = H * W
    Cmid = params["w1"].shape[0]
    Cout = params["w2"].shape[0]
    if residual and Cin != Cout:
        raise ValueError("residual DoubleConv needs in_channels == out_channels")

    x_flat = x.reshape(B, Cin, HW).astype(matmul_dtype)       # free reshape
    mask = _tap_masks(H, W, matmul_dtype)
    w1m = _conv_weight_matrix(params["w1"], matmul_dtype)     # (Cmid, 9*Cin)
    w2m = _conv_weight_matrix(params["w2"], matmul_dtype)     # (Cout, 9*Cmid)
    g1 = params["g1"].reshape(Cmid, 1).astype(jnp.float32)
    b1 = params["b1"].reshape(Cmid, 1).astype(jnp.float32)
    g2 = params["g2"].reshape(Cout, 1).astype(jnp.float32)
    b2 = params["b2"].reshape(Cout, 1).astype(jnp.float32)

    def const(shape):
        n = len(shape)
        return pl.BlockSpec(shape, lambda b, _n=n: (0,) * _n)

    out = pl.pallas_call(
        _make_double_conv_kernel(H, W, residual, matmul_dtype),
        out_shape=jax.ShapeDtypeStruct((B, Cout, HW), jnp.float32),
        grid_spec=pltpu.PrefetchScalarGridSpec(
            num_scalar_prefetch=0,
            grid=(B,),
            in_specs=[
                pl.BlockSpec((None, Cin, HW), lambda b: (b, 0, 0)),
                const((9, 1, HW)),
                const((Cmid, 9 * Cin)), const((Cmid, 1)), const((Cmid, 1)),
                const((Cout, 9 * Cmid)), const((Cout, 1)), const((Cout, 1)),
            ],
            out_specs=pl.BlockSpec((None, Cout, HW), lambda b: (b, 0, 0)),
        ),
        compiler_params=pltpu.CompilerParams(
            dimension_semantics=("parallel",)),
    )(x_flat, mask, w1m, g1, b1, w2m, g2, b2)
    return out.reshape(B, Cout, H, W)                         # free reshape


# --------------------------------------------------------------------------
# Pure-JAX reference (correctness checking only).
# --------------------------------------------------------------------------
def double_conv_ref(x, params, *, residual=False):
    x = x.astype(jnp.float32)

    def conv(h, w):
        return jax.lax.conv_general_dilated(
            h, w.astype(jnp.float32), window_strides=(1, 1), padding="SAME",
            dimension_numbers=("NCHW", "OIHW", "NCHW"),
            precision=jax.lax.Precision.HIGHEST)

    def gn(h, g, b):
        mu = jnp.mean(h, axis=(1, 2, 3), keepdims=True)
        var = jnp.mean(jnp.square(h - mu), axis=(1, 2, 3), keepdims=True)
        hn = (h - mu) * jax.lax.rsqrt(var + _GN_EPS)
        return hn * g.reshape(1, -1, 1, 1) + b.reshape(1, -1, 1, 1)

    gelu = lambda v: jax.nn.gelu(v, approximate=False)
    h = gelu(gn(conv(x, params["w1"]), params["g1"], params["b1"]))
    h = gn(conv(h, params["w2"]), params["g2"], params["b2"])
    return gelu(x + h) if residual else h


# --------------------------------------------------------------------------
# Deterministic parameter init (shapes dictated by the module's __init__).
# --------------------------------------------------------------------------
def init_double_conv_params(key, in_channels, out_channels, mid_channels=None):
    if mid_channels is None:
        mid_channels = out_channels
    k = jax.random.split(key, 6)

    def conv_w(kk, cout, cin):  # torch OIHW layout, bias=False
        return (jax.random.normal(kk, (cout, cin, 3, 3), jnp.float32)
                / math.sqrt(9 * cin))

    return dict(
        w1=conv_w(k[0], mid_channels, in_channels),
        g1=1.0 + 0.1 * jax.random.normal(k[1], (mid_channels,), jnp.float32),
        b1=0.1 * jax.random.normal(k[2], (mid_channels,), jnp.float32),
        w2=conv_w(k[3], out_channels, mid_channels),
        g2=1.0 + 0.1 * jax.random.normal(k[4], (out_channels,), jnp.float32),
        b2=0.1 * jax.random.normal(k[5], (out_channels,), jnp.float32),
    )


if __name__ == "__main__":
    B, H, W = 2, 16, 16
    key = jax.random.PRNGKey(0)
    kx1, kx2, kp1, kp2 = jax.random.split(key, 4)

    cases = []
    # plain DoubleConv(4 -> 8)  (mid_channels defaults to out_channels)
    x1 = jax.random.normal(kx1, (B, 4, H, W), jnp.float32)
    cases.append((x1, init_double_conv_params(kp1, 4, 8), False))
    # residual DoubleConv(8 -> 8, residual=True)
    x2 = jax.random.normal(kx2, (B, 8, H, W), jnp.float32)
    cases.append((x2, init_double_conv_params(kp2, 8, 8), True))

    for x, params, residual in cases:
        ref = double_conv_ref(x, params, residual=residual)

        # f32 MXU path: tight semantic check against the reference.
        out_f32 = jax.block_until_ready(
            double_conv_forward(x, params, residual=residual,
                                matmul_dtype=jnp.float32))
        assert out_f32.shape == ref.shape, (out_f32.shape, ref.shape)
        err_f32 = float(jnp.max(jnp.abs(out_f32 - ref)))
        assert err_f32 < 2e-3, f"f32 path max abs err vs reference: {err_f32}"

        # default bf16 MXU path (f32 accumulation): tolerance sized for bf16
        # operand rounding through two convs + two GroupNorms.
        out_bf16 = jax.block_until_ready(
            double_conv_forward(x, params, residual=residual))
        err_bf16 = float(jnp.max(jnp.abs(out_bf16 - ref)))
        assert err_bf16 < 1.5e-1, (
            f"bf16 path max abs err vs reference: {err_bf16}")

    print("KERNEL_OK")
</pallas_src>

<mosaic_0001>
module attributes {stable_mosaic.version = 11 : i64} {
  func.func @kernel(%arg0: i32, %arg1: memref<1x4x256xf32, #tpu.memory_space<vmem>>, %arg2: memref<9x1x256xf32, #tpu.memory_space<vmem>>, %arg3: memref<8x36xf32, #tpu.memory_space<vmem>>, %arg4: memref<8x1xf32, #tpu.memory_space<vmem>>, %arg5: memref<8x1xf32, #tpu.memory_space<vmem>>, %arg6: memref<8x72xf32, #tpu.memory_space<vmem>>, %arg7: memref<8x1xf32, #tpu.memory_space<vmem>>, %arg8: memref<8x1xf32, #tpu.memory_space<vmem>>, %arg9: memref<1x8x256xf32, #tpu.memory_space<vmem>>) attributes {dimension_semantics = [#tpu.dimension_semantics<parallel>], iteration_bounds = array<i64: 2>, scalar_prefetch = 0 : i64, scratch_operands = 0 : i64, tpu.core_type = #tpu.core_type<tc>, window_params = [{transform_indices = @transform_0, window_bounds = array<i64: 1, 4, 256>}, {pipeline_mode = #tpu.pipeline_mode<synchronous>, transform_indices = @transform_1, window_bounds = array<i64: 9, 1, 256>}, {pipeline_mode = #tpu.pipeline_mode<synchronous>, transform_indices = @transform_2, window_bounds = array<i64: 8, 36>}, {pipeline_mode = #tpu.pipeline_mode<synchronous>, transform_indices = @transform_3, window_bounds = array<i64: 8, 1>}, {pipeline_mode = #tpu.pipeline_mode<synchronous>, transform_indices = @transform_4, window_bounds = array<i64: 8, 1>}, {pipeline_mode = #tpu.pipeline_mode<synchronous>, transform_indices = @transform_5, window_bounds = array<i64: 8, 72>}, {pipeline_mode = #tpu.pipeline_mode<synchronous>, transform_indices = @transform_6, window_bounds = array<i64: 8, 1>}, {pipeline_mode = #tpu.pipeline_mode<synchronous>, transform_indices = @transform_7, window_bounds = array<i64: 8, 1>}, {transform_indices = @transform_8, window_bounds = array<i64: 1, 8, 256>}]} {
    %c0 = arith.constant 0 : index
    %c0_0 = arith.constant 0 : index
    %c0_1 = arith.constant 0 : index
    %0 = vector.load %arg2[%c0, %c0_0, %c0_1] : memref<9x1x256xf32, #tpu.memory_space<vmem>>, vector<9x1x256xf32>
    %c0_2 = arith.constant 0 : index
    %c0_3 = arith.constant 0 : index
    %c0_4 = arith.constant 0 : index
    %1 = vector.load %arg1[%c0_2, %c0_3, %c0_4] : memref<1x4x256xf32, #tpu.memory_space<vmem>>, vector<1x4x256xf32>
    %2 = vector.shape_cast %1 : vector<1x4x256xf32> to vector<4x256xf32>
    %3 = vector.extract_strided_slice %2 {offsets = [0, 239], sizes = [4, 17], strides = [1, 1]} : vector<4x256xf32> to vector<4x17xf32>
    %4 = vector.extract_strided_slice %2 {offsets = [0, 0], sizes = [4, 239], strides = [1, 1]} : vector<4x256xf32> to vector<4x239xf32>
    %5 = tpu.concatenate %3, %4 in 1 : vector<4x17xf32>, vector<4x239xf32> -> vector<4x256xf32>
    %6 = vector.extract_strided_slice %0 {offsets = [0, 0, 0], sizes = [1, 1, 256], strides = [1, 1, 1]} : vector<9x1x256xf32> to vector<1x1x256xf32>
    %7 = vector.shape_cast %6 : vector<1x1x256xf32> to vector<1x256xf32>
    %8 = vector.broadcast %7 : vector<1x256xf32> to vector<4x256xf32>
    %9 = arith.mulf %5, %8 : vector<4x256xf32>
    %10 = vector.extract_strided_slice %2 {offsets = [0, 240], sizes = [4, 16], strides = [1, 1]} : vector<4x256xf32> to vector<4x16xf32>
    %11 = vector.extract_strided_slice %2 {offsets = [0, 0], sizes = [4, 240], strides = [1, 1]} : vector<4x256xf32> to vector<4x240xf32>
    %12 = tpu.concatenate %10, %11 in 1 : vector<4x16xf32>, vector<4x240xf32> -> vector<4x256xf32>
    %13 = vector.extract_strided_slice %0 {offsets = [1, 0, 0], sizes = [1, 1, 256], strides = [1, 1, 1]} : vector<9x1x256xf32> to vector<1x1x256xf32>
    %14 = vector.shape_cast %13 : vector<1x1x256xf32> to vector<1x256xf32>
    %15 = vector.broadcast %14 : vector<1x256xf32> to vector<4x256xf32>
    %16 = arith.mulf %12, %15 : vector<4x256xf32>
    %17 = vector.extract_strided_slice %2 {offsets = [0, 241], sizes = [4, 15], strides = [1, 1]} : vector<4x256xf32> to vector<4x15xf32>
    %18 = vector.extract_strided_slice %2 {offsets = [0, 0], sizes = [4, 241], strides = [1, 1]} : vector<4x256xf32> to vector<4x241xf32>
    %19 = tpu.concatenate %17, %18 in 1 : vector<4x15xf32>, vector<4x241xf32> -> vector<4x256xf32>
    %20 = vector.extract_strided_slice %0 {offsets = [2, 0, 0], sizes = [1, 1, 256], strides = [1, 1, 1]} : vector<9x1x256xf32> to vector<1x1x256xf32>
    %21 = vector.shape_cast %20 : vector<1x1x256xf32> to vector<1x256xf32>
    %22 = vector.broadcast %21 : vector<1x256xf32> to vector<4x256xf32>
    %23 = arith.mulf %19, %22 : vector<4x256xf32>
    %24 = vector.extract_strided_slice %2 {offsets = [0, 255], sizes = [4, 1], strides = [1, 1]} : vector<4x256xf32> to vector<4x1xf32>
    %25 = vector.extract_strided_slice %2 {offsets = [0, 0], sizes = [4, 255], strides = [1, 1]} : vector<4x256xf32> to vector<4x255xf32>
    %26 = tpu.concatenate %24, %25 in 1 : vector<4x1xf32>, vector<4x255xf32> -> vector<4x256xf32>
    %27 = vector.extract_strided_slice %0 {offsets = [3, 0, 0], sizes = [1, 1, 256], strides = [1, 1, 1]} : vector<9x1x256xf32> to vector<1x1x256xf32>
    %28 = vector.shape_cast %27 : vector<1x1x256xf32> to vector<1x256xf32>
    %29 = vector.broadcast %28 : vector<1x256xf32> to vector<4x256xf32>
    %30 = arith.mulf %26, %29 : vector<4x256xf32>
    %31 = vector.extract_strided_slice %2 {offsets = [0, 1], sizes = [4, 255], strides = [1, 1]} : vector<4x256xf32> to vector<4x255xf32>
    %32 = vector.extract_strided_slice %2 {offsets = [0, 0], sizes = [4, 1], strides = [1, 1]} : vector<4x256xf32> to vector<4x1xf32>
    %33 = tpu.concatenate %31, %32 in 1 : vector<4x255xf32>, vector<4x1xf32> -> vector<4x256xf32>
    %34 = vector.extract_strided_slice %0 {offsets = [5, 0, 0], sizes = [1, 1, 256], strides = [1, 1, 1]} : vector<9x1x256xf32> to vector<1x1x256xf32>
    %35 = vector.shape_cast %34 : vector<1x1x256xf32> to vector<1x256xf32>
    %36 = vector.broadcast %35 : vector<1x256xf32> to vector<4x256xf32>
    %37 = arith.mulf %33, %36 : vector<4x256xf32>
    %38 = vector.extract_strided_slice %2 {offsets = [0, 15], sizes = [4, 241], strides = [1, 1]} : vector<4x256xf32> to vector<4x241xf32>
    %39 = vector.extract_strided_slice %2 {offsets = [0, 0], sizes = [4, 15], strides = [1, 1]} : vector<4x256xf32> to vector<4x15xf32>
    %40 = tpu.concatenate %38, %39 in 1 : vector<4x241xf32>, vector<4x15xf32> -> vector<4x256xf32>
    %41 = vector.extract_strided_slice %0 {offsets = [6, 0, 0], sizes = [1, 1, 256], strides = [1, 1, 1]} : vector<9x1x256xf32> to vector<1x1x256xf32>
    %42 = vector.shape_cast %41 : vector<1x1x256xf32> to vector<1x256xf32>
    %43 = vector.broadcast %42 : vector<1x256xf32> to vector<4x256xf32>
    %44 = arith.mulf %40, %43 : vector<4x256xf32>
    %45 = vector.extract_strided_slice %2 {offsets = [0, 16], sizes = [4, 240], strides = [1, 1]} : vector<4x256xf32> to vector<4x240xf32>
    %46 = vector.extract_strided_slice %2 {offsets = [0, 0], sizes = [4, 16], strides = [1, 1]} : vector<4x256xf32> to vector<4x16xf32>
    %47 = tpu.concatenate %45, %46 in 1 : vector<4x240xf32>, vector<4x16xf32> -> vector<4x256xf32>
    %48 = vector.extract_strided_slice %0 {offsets = [7, 0, 0], sizes = [1, 1, 256], strides = [1, 1, 1]} : vector<9x1x256xf32> to vector<1x1x256xf32>
    %49 = vector.shape_cast %48 : vector<1x1x256xf32> to vector<1x256xf32>
    %50 = vector.broadcast %49 : vector<1x256xf32> to vector<4x256xf32>
    %51 = arith.mulf %47, %50 : vector<4x256xf32>
    %52 = vector.extract_strided_slice %2 {offsets = [0, 17], sizes = [4, 239], strides = [1, 1]} : vector<4x256xf32> to vector<4x239xf32>
    %53 = vector.extract_strided_slice %2 {offsets = [0, 0], sizes = [4, 17], strides = [1, 1]} : vector<4x256xf32> to vector<4x17xf32>
    %54 = tpu.concatenate %52, %53 in 1 : vector<4x239xf32>, vector<4x17xf32> -> vector<4x256xf32>
    %55 = vector.extract_strided_slice %0 {offsets = [8, 0, 0], sizes = [1, 1, 256], strides = [1, 1, 1]} : vector<9x1x256xf32> to vector<1x1x256xf32>
    %56 = vector.shape_cast %55 : vector<1x1x256xf32> to vector<1x256xf32>
    %57 = vector.broadcast %56 : vector<1x256xf32> to vector<4x256xf32>
    %58 = arith.mulf %54, %57 : vector<4x256xf32>
    %59 = tpu.concatenate %9, %16, %23, %30, %2, %37, %44, %51, %58 in 0 : vector<4x256xf32>, vector<4x256xf32>, vector<4x256xf32>, vector<4x256xf32>, vector<4x256xf32>, vector<4x256xf32>, vector<4x256xf32>, vector<4x256xf32>, vector<4x256xf32> -> vector<36x256xf32>
    %c0_5 = arith.constant 0 : index
    %c0_6 = arith.constant 0 : index
    %60 = vector.load %arg3[%c0_5, %c0_6] : memref<8x36xf32, #tpu.memory_space<vmem>>, vector<8x36xf32>
    %cst = arith.constant dense<0.000000e+00> : vector<8x256xf32>
    %61 = tpu.matmul %60, %59, %cst {dimension_numbers = #tpu.dot_dimension_numbers<[1], [0], [0], [1], [0, 0, 1, 1], [], []>} : vector<8x36xf32>, vector<36x256xf32>, vector<8x256xf32> -> vector<8x256xf32>
    %62 = vector.shape_cast %61 : vector<8x256xf32> to vector<1x8x256xf32>
    %cst_7 = arith.constant dense<0.000000e+00> : vector<1xf32>
    %63 = vector.multi_reduction <add>, %62, %cst_7 [1, 2] : vector<1x8x256xf32> to vector<1xf32>
    %64 = vector.shape_cast %63 : vector<1xf32> to vector<1x1x1xf32>
    %65 = vector.extract %64[0, 0, 0] : f32 from vector<1x1x1xf32>
    %66 = arith.mulf %61, %61 : vector<8x256xf32>
    %67 = vector.shape_cast %66 : vector<8x256xf32> to vector<1x8x256xf32>
    %cst_8 = arith.constant dense<0.000000e+00> : vector<1xf32>
    %68 = vector.multi_reduction <add>, %67, %cst_8 [1, 2] : vector<1x8x256xf32> to vector<1xf32>
    %69 = vector.shape_cast %68 : vector<1xf32> to vector<1x1x1xf32>
    %70 = vector.extract %69[0, 0, 0] : f32 from vector<1x1x1xf32>
    %cst_9 = arith.constant 4.8828125E-4 : f32
    %71 = arith.mulf %65, %cst_9 : f32
    %cst_10 = arith.constant 4.8828125E-4 : f32
    %72 = arith.mulf %70, %cst_10 : f32
    %73 = arith.mulf %71, %71 : f32
    %74 = arith.subf %72, %73 : f32
    %cst_11 = arith.constant 9.99999974E-6 : f32
    %75 = arith.addf %74, %cst_11 : f32
    %76 = math.rsqrt %75 : f32
    %c0_12 = arith.constant 0 : index
    %c0_13 = arith.constant 0 : index
    %77 = vector.load %arg4[%c0_12, %c0_13] : memref<8x1xf32, #tpu.memory_space<vmem>>, vector<8x1xf32>
    %78 = vector.broadcast %76 : f32 to vector<8x1xf32>
    %79 = arith.mulf %78, %77 : vector<8x1xf32>
    %c0_14 = arith.constant 0 : index
    %c0_15 = arith.constant 0 : index
    %80 = vector.load %arg5[%c0_14, %c0_15] : memref<8x1xf32, #tpu.memory_space<vmem>>, vector<8x1xf32>
    %81 = vector.broadcast %71 : f32 to vector<8x1xf32>
    %82 = arith.mulf %81, %79 : vector<8x1xf32>
    %83 = arith.subf %80, %82 : vector<8x1xf32>
    %84 = vector.broadcast %79 : vector<8x1xf32> to vector<8x256xf32>
    %85 = arith.mulf %61, %84 : vector<8x256xf32>
    %86 = vector.broadcast %83 : vector<8x1xf32> to vector<8x256xf32>
    %87 = arith.addf %85, %86 : vector<8x256xf32>
    %cst_16 = arith.constant 5.000000e-01 : f32
    %88 = vector.broadcast %cst_16 : f32 to vector<8x256xf32>
    %89 = arith.mulf %88, %87 : vector<8x256xf32>
    %cst_17 = arith.constant 0.707106769 : f32
    %90 = vector.broadcast %cst_17 : f32 to vector<8x256xf32>
    %91 = arith.mulf %87, %90 : vector<8x256xf32>
    %cst_18 = arith.constant 0.000000e+00 : f32
    %92 = vector.broadcast %cst_18 : f32 to vector<8x256xf32>
    %93 = arith.cmpf oge, %91, %92 : vector<8x256xf32>
    %cst_19 = arith.constant 1.000000e+00 : f32
    %cst_20 = arith.constant -1.000000e+00 : f32
    %94 = vector.broadcast %cst_19 : f32 to vector<8x256xf32>
    %95 = vector.broadcast %cst_20 : f32 to vector<8x256xf32>
    %96 = arith.select %93, %94, %95 : vector<8x256xi1>, vector<8x256xf32>
    %97 = math.absf %91 : vector<8x256xf32>
    %cst_21 = arith.constant 0.327591091 : f32
    %98 = vector.broadcast %cst_21 : f32 to vector<8x256xf32>
    %99 = arith.mulf %98, %97 : vector<8x256xf32>
    %cst_22 = arith.constant 1.000000e+00 : f32
    %100 = vector.broadcast %cst_22 : f32 to vector<8x256xf32>
    %101 = arith.addf %100, %99 : vector<8x256xf32>
    %cst_23 = arith.constant 1.000000e+00 : f32
    %102 = vector.broadcast %cst_23 : f32 to vector<8x256xf32>
    %103 = arith.divf %102, %101 : vector<8x256xf32>
    %cst_24 = arith.constant 1.06140542 : f32
    %104 = vector.broadcast %cst_24 : f32 to vector<8x256xf32>
    %105 = arith.mulf %104, %103 : vector<8x256xf32>
    %cst_25 = arith.constant -1.45315206 : f32
    %106 = vector.broadcast %cst_25 : f32 to vector<8x256xf32>
    %107 = arith.addf %105, %106 : vector<8x256xf32>
    %108 = arith.mulf %107, %103 : vector<8x256xf32>
    %cst_26 = arith.constant 1.42141378 : f32
    %109 = vector.broadcast %cst_26 : f32 to vector<8x256xf32>
    %110 = arith.addf %108, %109 : vector<8x256xf32>
    %111 = arith.mulf %110, %103 : vector<8x256xf32>
    %cst_27 = arith.constant -0.284496725 : f32
    %112 = vector.broadcast %cst_27 : f32 to vector<8x256xf32>
    %113 = arith.addf %111, %112 : vector<8x256xf32>
    %114 = arith.mulf %113, %103 : vector<8x256xf32>
    %cst_28 = arith.constant 0.254829586 : f32
    %115 = vector.broadcast %cst_28 : f32 to vector<8x256xf32>
    %116 = arith.addf %114, %115 : vector<8x256xf32>
    %117 = arith.mulf %116, %103 : vector<8x256xf32>
    %cst_29 = arith.constant 0.000000e+00 : f32
    %118 = vector.broadcast %cst_29 : f32 to vector<8x256xf32>
    %119 = arith.subf %118, %97 : vector<8x256xf32>
    %120 = arith.mulf %119, %97 : vector<8x256xf32>
    %121 = math.exp %120 : vector<8x256xf32>
    %122 = arith.mulf %117, %121 : vector<8x256xf32>
    %cst_30 = arith.constant 1.000000e+00 : f32
    %123 = vector.broadcast %cst_30 : f32 to vector<8x256xf32>
    %124 = arith.subf %123, %122 : vector<8x256xf32>
    %125 = arith.mulf %96, %124 : vector<8x256xf32>
    %cst_31 = arith.constant 1.000000e+00 : f32
    %126 = vector.broadcast %cst_31 : f32 to vector<8x256xf32>
    %127 = arith.addf %126, %125 : vector<8x256xf32>
    %128 = arith.mulf %89, %127 : vector<8x256xf32>
    %129 = vector.extract_strided_slice %128 {offsets = [0, 239], sizes = [8, 17], strides = [1, 1]} : vector<8x256xf32> to vector<8x17xf32>
    %130 = vector.extract_strided_slice %128 {offsets = [0, 0], sizes = [8, 239], strides = [1, 1]} : vector<8x256xf32> to vector<8x239xf32>
    %131 = tpu.concatenate %129, %130 in 1 : vector<8x17xf32>, vector<8x239xf32> -> vector<8x256xf32>
    %132 = vector.extract_strided_slice %0 {offsets = [0, 0, 0], sizes = [1, 1, 256], strides = [1, 1, 1]} : vector<9x1x256xf32> to vector<1x1x256xf32>
    %133 = vector.shape_cast %132 : vector<1x1x256xf32> to vector<1x256xf32>
    %134 = vector.broadcast %133 : vector<1x256xf32> to vector<8x256xf32>
    %135 = arith.mulf %131, %134 : vector<8x256xf32>
    %136 = vector.extract_strided_slice %128 {offsets = [0, 240], sizes = [8, 16], strides = [1, 1]} : vector<8x256xf32> to vector<8x16xf32>
    %137 = vector.extract_strided_slice %128 {offsets = [0, 0], sizes = [8, 240], strides = [1, 1]} : vector<8x256xf32> to vector<8x240xf32>
    %138 = tpu.concatenate %136, %137 in 1 : vector<8x16xf32>, vector<8x240xf32> -> vector<8x256xf32>
    %139 = vector.extract_strided_slice %0 {offsets = [1, 0, 0], sizes = [1, 1, 256], strides = [1, 1, 1]} : vector<9x1x256xf32> to vector<1x1x256xf32>
    %140 = vector.shape_cast %139 : vector<1x1x256xf32> to vector<1x256xf32>
    %141 = vector.broadcast %140 : vector<1x256xf32> to vector<8x256xf32>
    %142 = arith.mulf %138, %141 : vector<8x256xf32>
    %143 = vector.extract_strided_slice %128 {offsets = [0, 241], sizes = [8, 15], strides = [1, 1]} : vector<8x256xf32> to vector<8x15xf32>
    %144 = vector.extract_strided_slice %128 {offsets = [0, 0], sizes = [8, 241], strides = [1, 1]} : vector<8x256xf32> to vector<8x241xf32>
    %145 = tpu.concatenate %143, %144 in 1 : vector<8x15xf32>, vector<8x241xf32> -> vector<8x256xf32>
    %146 = vector.extract_strided_slice %0 {offsets = [2, 0, 0], sizes = [1, 1, 256], strides = [1, 1, 1]} : vector<9x1x256xf32> to vector<1x1x256xf32>
    %147 = vector.shape_cast %146 : vector<1x1x256xf32> to vector<1x256xf32>
    %148 = vector.broadcast %147 : vector<1x256xf32> to vector<8x256xf32>
    %149 = arith.mulf %145, %148 : vector<8x256xf32>
    %150 = vector.extract_strided_slice %128 {offsets = [0, 255], sizes = [8, 1], strides = [1, 1]} : vector<8x256xf32> to vector<8x1xf32>
    %151 = vector.extract_strided_slice %128 {offsets = [0, 0], sizes = [8, 255], strides = [1, 1]} : vector<8x256xf32> to vector<8x255xf32>
    %152 = tpu.concatenate %150, %151 in 1 : vector<8x1xf32>, vector<8x255xf32> -> vector<8x256xf32>
    %153 = vector.extract_strided_slice %0 {offsets = [3, 0, 0], sizes = [1, 1, 256], strides = [1, 1, 1]} : vector<9x1x256xf32> to vector<1x1x256xf32>
    %154 = vector.shape_cast %153 : vector<1x1x256xf32> to vector<1x256xf32>
    %155 = vector.broadcast %154 : vector<1x256xf32> to vector<8x256xf32>
    %156 = arith.mulf %152, %155 : vector<8x256xf32>
    %157 = vector.extract_strided_slice %128 {offsets = [0, 1], sizes = [8, 255], strides = [1, 1]} : vector<8x256xf32> to vector<8x255xf32>
    %158 = vector.extract_strided_slice %128 {offsets = [0, 0], sizes = [8, 1], strides = [1, 1]} : vector<8x256xf32> to vector<8x1xf32>
    %159 = tpu.concatenate %157, %158 in 1 : vector<8x255xf32>, vector<8x1xf32> -> vector<8x256xf32>
    %160 = vector.extract_strided_slice %0 {offsets = [5, 0, 0], sizes = [1, 1, 256], strides = [1, 1, 1]} : vector<9x1x256xf32> to vector<1x1x256xf32>
    %161 = vector.shape_cast %160 : vector<1x1x256xf32> to vector<1x256xf32>
    %162 = vector.broadcast %161 : vector<1x256xf32> to vector<8x256xf32>
    %163 = arith.mulf %159, %162 : vector<8x256xf32>
    %164 = vector.extract_strided_slice %128 {offsets = [0, 15], sizes = [8, 241], strides = [1, 1]} : vector<8x256xf32> to vector<8x241xf32>
    %165 = vector.extract_strided_slice %128 {offsets = [0, 0], sizes = [8, 15], strides = [1, 1]} : vector<8x256xf32> to vector<8x15xf32>
    %166 = tpu.concatenate %164, %165 in 1 : vector<8x241xf32>, vector<8x15xf32> -> vector<8x256xf32>
    %167 = vector.extract_strided_slice %0 {offsets = [6, 0, 0], sizes = [1, 1, 256], strides = [1, 1, 1]} : vector<9x1x256xf32> to vector<1x1x256xf32>
    %168 = vector.shape_cast %167 : vector<1x1x256xf32> to vector<1x256xf32>
    %169 = vector.broadcast %168 : vector<1x256xf32> to vector<8x256xf32>
    %170 = arith.mulf %166, %169 : vector<8x256xf32>
    %171 = vector.extract_strided_slice %128 {offsets = [0, 16], sizes = [8, 240], strides = [1, 1]} : vector<8x256xf32> to vector<8x240xf32>
    %172 = vector.extract_strided_slice %128 {offsets = [0, 0], sizes = [8, 16], strides = [1, 1]} : vector<8x256xf32> to vector<8x16xf32>
    %173 = tpu.concatenate %171, %172 in 1 : vector<8x240xf32>, vector<8x16xf32> -> vector<8x256xf32>
    %174 = vector.extract_strided_slice %0 {offsets = [7, 0, 0], sizes = [1, 1, 256], strides = [1, 1, 1]} : vector<9x1x256xf32> to vector<1x1x256xf32>
    %175 = vector.shape_cast %174 : vector<1x1x256xf32> to vector<1x256xf32>
    %176 = vector.broadcast %175 : vector<1x256xf32> to vector<8x256xf32>
    %177 = arith.mulf %173, %176 : vector<8x256xf32>
    %178 = vector.extract_strided_slice %128 {offsets = [0, 17], sizes = [8, 239], strides = [1, 1]} : vector<8x256xf32> to vector<8x239xf32>
    %179 = vector.extract_strided_slice %128 {offsets = [0, 0], sizes = [8, 17], strides = [1, 1]} : vector<8x256xf32> to vector<8x17xf32>
    %180 = tpu.concatenate %178, %179 in 1 : vector<8x239xf32>, vector<8x17xf32> -> vector<8x256xf32>
    %181 = vector.extract_strided_slice %0 {offsets = [8, 0, 0], sizes = [1, 1, 256], strides = [1, 1, 1]} : vector<9x1x256xf32> to vector<1x1x256xf32>
    %182 = vector.shape_cast %181 : vector<1x1x256xf32> to vector<1x256xf32>
    %183 = vector.broadcast %182 : vector<1x256xf32> to vector<8x256xf32>
    %184 = arith.mulf %180, %183 : vector<8x256xf32>
    %185 = tpu.concatenate %135, %142, %149, %156, %128, %163, %170, %177, %184 in 0 : vector<8x256xf32>, vector<8x256xf32>, vector<8x256xf32>, vector<8x256xf32>, vector<8x256xf32>, vector<8x256xf32>, vector<8x256xf32>, vector<8x256xf32>, vector<8x256xf32> -> vector<72x256xf32>
    %c0_32 = arith.constant 0 : index
    %c0_33 = arith.constant 0 : index
    %186 = vector.load %arg6[%c0_32, %c0_33] : memref<8x72xf32, #tpu.memory_space<vmem>>, vector<8x72xf32>
    %cst_34 = arith.constant dense<0.000000e+00> : vector<8x256xf32>
    %187 = tpu.matmul %186, %185, %cst_34 {dimension_numbers = #tpu.dot_dimension_numbers<[1], [0], [0], [1], [0, 0, 1, 1], [], []>} : vector<8x72xf32>, vector<72x256xf32>, vector<8x256xf32> -> vector<8x256xf32>
    %188 = vector.shape_cast %187 : vector<8x256xf32> to vector<1x8x256xf32>
    %cst_35 = arith.constant dense<0.000000e+00> : vector<1xf32>
    %189 = vector.multi_reduction <add>, %188, %cst_35 [1, 2] : vector<1x8x256xf32> to vector<1xf32>
    %190 = vector.shape_cast %189 : vector<1xf32> to vector<1x1x1xf32>
    %191 = vector.extract %190[0, 0, 0] : f32 from vector<1x1x1xf32>
    %192 = arith.mulf %187, %187 : vector<8x256xf32>
    %193 = vector.shape_cast %192 : vector<8x256xf32> to vector<1x8x256xf32>
    %cst_36 = arith.constant dense<0.000000e+00> : vector<1xf32>
    %194 = vector.multi_reduction <add>, %193, %cst_36 [1, 2] : vector<1x8x256xf32> to vector<1xf32>
    %195 = vector.shape_cast %194 : vector<1xf32> to vector<1x1x1xf32>
    %196 = vector.extract %195[0, 0, 0] : f32 from vector<1x1x1xf32>
    %cst_37 = arith.constant 4.8828125E-4 : f32
    %197 = arith.mulf %191, %cst_37 : f32
    %cst_38 = arith.constant 4.8828125E-4 : f32
    %198 = arith.mulf %196, %cst_38 : f32
    %199 = arith.mulf %197, %197 : f32
    %200 = arith.subf %198, %199 : f32
    %cst_39 = arith.constant 9.99999974E-6 : f32
    %201 = arith.addf %200, %cst_39 : f32
    %202 = math.rsqrt %201 : f32
    %c0_40 = arith.constant 0 : index
    %c0_41 = arith.constant 0 : index
    %203 = vector.load %arg7[%c0_40, %c0_41] : memref<8x1xf32, #tpu.memory_space<vmem>>, vector<8x1xf32>
    %204 = vector.broadcast %202 : f32 to vector<8x1xf32>
    %205 = arith.mulf %204, %203 : vector<8x1xf32>
    %c0_42 = arith.constant 0 : index
    %c0_43 = arith.constant 0 : index
    %206 = vector.load %arg8[%c0_42, %c0_43] : memref<8x1xf32, #tpu.memory_space<vmem>>, vector<8x1xf32>
    %207 = vector.broadcast %197 : f32 to vector<8x1xf32>
    %208 = arith.mulf %207, %205 : vector<8x1xf32>
    %209 = arith.subf %206, %208 : vector<8x1xf32>
    %210 = vector.broadcast %205 : vector<8x1xf32> to vector<8x256xf32>
    %211 = arith.mulf %187, %210 : vector<8x256xf32>
    %212 = vector.broadcast %209 : vector<8x1xf32> to vector<8x256xf32>
    %213 = arith.addf %211, %212 : vector<8x256xf32>
    %c0_44 = arith.constant 0 : index
    %c0_45 = arith.constant 0 : index
    %c0_46 = arith.constant 0 : index
    %214 = vector.load %arg9[%c0_44, %c0_45, %c0_46] : memref<1x8x256xf32, #tpu.memory_space<vmem>>, vector<1x8x256xf32>
    %215 = vector.shape_cast %214 : vector<1x8x256xf32> to vector<8x256xf32>
    %216 = vector.shape_cast %213 : vector<8x256xf32> to vector<1x8x256xf32>
    tpu.vector_store %arg9[%c0_44, %c0_45, %c0_46], %216 {strides = array<i32>} : memref<1x8x256xf32, #tpu.memory_space<vmem>>, vector<1x8x256xf32>,
    return
  }
  func.func @transform_0(%arg0: i32) -> (i32, i32, i32) {
    %c0_i32 = arith.constant 0 : i32
    %c0_i32_0 = arith.constant 0 : i32
    %c0_i32_1 = arith.constant 0 : i32
    return %arg0, %c0_i32, %c0_i32_0 : i32, i32, i32
  }
  func.func @transform_1(%arg0: i32) -> (i32, i32, i32) {
    %c0_i32 = arith.constant 0 : i32
    %c0_i32_0 = arith.constant 0 : i32
    %c0_i32_1 = arith.constant 0 : i32
    %c0_i32_2 = arith.constant 0 : i32
    return %c0_i32, %c0_i32_0, %c0_i32_1 : i32, i32, i32
  }
  func.func @transform_2(%arg0: i32) -> (i32, i32) {
    %c0_i32 = arith.constant 0 : i32
    %c0_i32_0 = arith.constant 0 : i32
    %c0_i32_1 = arith.constant 0 : i32
    return %c0_i32, %c0_i32_0 : i32, i32
  }
  func.func @transform_3(%arg0: i32) -> (i32, i32) {
    %c0_i32 = arith.constant 0 : i32
    %c0_i32_0 = arith.constant 0 : i32
    %c0_i32_1 = arith.constant 0 : i32
    return %c0_i32, %c0_i32_0 : i32, i32
  }
  func.func @transform_4(%arg0: i32) -> (i32, i32) {
    %c0_i32 = arith.constant 0 : i32
    %c0_i32_0 = arith.constant 0 : i32
    %c0_i32_1 = arith.constant 0 : i32
    return %c0_i32, %c0_i32_0 : i32, i32
  }
  func.func @transform_5(%arg0: i32) -> (i32, i32) {
    %c0_i32 = arith.constant 0 : i32
    %c0_i32_0 = arith.constant 0 : i32
    %c0_i32_1 = arith.constant 0 : i32
    return %c0_i32, %c0_i32_0 : i32, i32
  }
  func.func @transform_6(%arg0: i32) -> (i32, i32) {
    %c0_i32 = arith.constant 0 : i32
    %c0_i32_0 = arith.constant 0 : i32
    %c0_i32_1 = arith.constant 0 : i32
    return %c0_i32, %c0_i32_0 : i32, i32
  }
  func.func @transform_7(%arg0: i32) -> (i32, i32) {
    %c0_i32 = arith.constant 0 : i32
    %c0_i32_0 = arith.constant 0 : i32
    %c0_i32_1 = arith.constant 0 : i32
    return %c0_i32, %c0_i32_0 : i32, i32
  }
  func.func @transform_8(%arg0: i32) -> (i32, i32, i32) {
    %c0_i32 = arith.constant 0 : i32
    %c0_i32_0 = arith.constant 0 : i32
    %c0_i32_1 = arith.constant 0 : i32
    return %arg0, %c0_i32, %c0_i32_0 : i32, i32, i32
  }
}

</mosaic_0001>

<llo_original>
// kernel: double_conv_forward.1
$region0: #{double_conv_forward.1}
  #allocation0 [shape = 'u32[]', space=smem, size = 0x4, offset = 0x4, fixed_abs, tag = 'smem constant byte address 0x4 - core index']
  #allocation1 [shape = 'u32[144,128]{1,0:T(1,128)}', space=vmem, size = 0x12000, scoped, tag = 'internal scratch']
  %s0 = inlined_call_operand.vmem [shape: f32[2,4,256], index: 0, kind: input, shape index: {}]
  %s1 = inlined_call_operand.vmem [shape: f32[9,1,256], index: 1, kind: input, shape index: {}]
  %s2 = inlined_call_operand.vmem [shape: f32[8,36], index: 2, kind: input, shape index: {}]
  %s3 = inlined_call_operand.vmem [shape: f32[8,1], index: 3, kind: input, shape index: {}]
  %s4 = inlined_call_operand.vmem [shape: f32[8,1], index: 4, kind: input, shape index: {}]
  %s5 = inlined_call_operand.vmem [shape: f32[8,72], index: 5, kind: input, shape index: {}]
  %s6 = inlined_call_operand.vmem [shape: f32[8,1], index: 6, kind: input, shape index: {}]
  %s7 = inlined_call_operand.vmem [shape: f32[8,1], index: 7, kind: input, shape index: {}]
  %s8 = inlined_call_operand.vmem [shape: f32[2,8,256], index: 8, kind: output, shape index: {}]
  %s9 = sld [smem:[#allocation0]]
  $region65: #{double_conv_forward.1} parent=0
    _
  %s11 = ssub.s32 1, %s9
  %s12 = scalar_select 0, %s11, %s9
  loop: start=0, step=1, limit=4
  $region2: #{double_conv_forward.1} parent=0 // loop_pre_header
    _
  $region3: #{double_conv_forward.1} parent=0 // loop_header
    %s14 = sphi 0, %s18
    %p15 = scmp.ge.s32.totalorder %s14, 4
    %s24 = sphi 0, %s26
    %s27 = sphi 0, %s24
    %s28 = sphi 0, %s27
    %s44 = sphi 0, %s28
    %s48 = sphi 0, %s48
    %s50 = sphi 0, %s48
    %s51 = sphi 0, %s50
    %s65 = sphi 0, %s51
    %s69 = sphi 0, %s69
    %s71 = sphi 0, %s69
    %s72 = sphi 0, %s71
    %s86 = sphi 0, %s72
    %s90 = sphi 0, %s90
    %s92 = sphi 0, %s90
    %s93 = sphi 0, %s92
    %s107 = sphi 0, %s93
    %s111 = sphi 0, %s111
    %s113 = sphi 0, %s111
    %s114 = sphi 0, %s113
    %s128 = sphi 0, %s114
    %s132 = sphi 0, %s132
    %s134 = sphi 0, %s132
    %s135 = sphi 0, %s134
    %s149 = sphi 0, %s135
    %s153 = sphi 0, %s153
    %s155 = sphi 0, %s153
    %s156 = sphi 0, %s155
    %s170 = sphi 0, %s156
    %s174 = sphi 0, %s174
    %s176 = sphi 0, %s174
    %s177 = sphi 0, %s176
    %s191 = sphi 0, %s177
    %s197 = sphi 0, %s199
    %s200 = sphi 0, %s197
    %s201 = sphi 0, %s200
    %s217 = sphi 0, %s201
  $region4: #{double_conv_forward.1} parent=0 // loop_header_branch
    %17 = sbr.rel (%p15) target = $region8
  $region5: #{double_conv_forward.1} parent=0 // loop_body
    %s19 = ssub.s32 %s14, 1
    %s20 = ssub.s32 %s14, 2
    %s21 = sadd.s32 %s14, 1
    %s22 = ssub.s32 %s14, %s21
    %p23 = scmp.eq.s32.totalorder %s22, 0
    %s25 = sadd.s32 %s24, 1
    %s26 = scalar_select %p23, %s24, %s25
    %p29 = pneg %p23
    %p30 = scmp.eq.s32.totalorder %s14, 1
    %p31 = por %p29, %p30
    %p32 = scmp.ne.s32.totalorder %s24, %s27
    %p33 = scmp.eq.s32.totalorder %s14, 0
    %p34 = por %p32, %p33
    %p35 = scmp.ne.s32.totalorder %s24, %s27
    %p36 = scmp.eq.s32.totalorder %s19, 1
    %p37 = por %p35, %p36
    %p38 = scmp.ne.s32.totalorder %s27, %s28
    %p39 = scmp.eq.s32.totalorder %s19, 0
    %p40 = por %p38, %p39
    %p41 = scmp.ne.s32.totalorder %s27, %s28
    %p42 = scmp.eq.s32.totalorder %s20, 1
    %p43 = por %p41, %p42
    %p45 = scmp.ne.s32.totalorder %s28, %s44
    %p46 = scmp.eq.s32.totalorder %s20, 0
    %p47 = por %p45, %p46
    %s49 = sadd.s32 %s48, 1
    %p52 = scmp.eq.s32.totalorder %s14, 1
    %p53 = scmp.ne.s32.totalorder %s48, %s50
    %p54 = scmp.eq.s32.totalorder %s14, 0
    %p55 = por %p53, %p54
    %p56 = scmp.ne.s32.totalorder %s48, %s50
    %p57 = scmp.eq.s32.totalorder %s19, 1
    %p58 = por %p56, %p57
    %p59 = scmp.ne.s32.totalorder %s50, %s51
    %p60 = scmp.eq.s32.totalorder %s19, 0
    %p61 = por %p59, %p60
    %p62 = scmp.ne.s32.totalorder %s50, %s51
    %p63 = scmp.eq.s32.totalorder %s20, 1
    %p64 = por %p62, %p63
    %p66 = scmp.ne.s32.totalorder %s51, %s65
    %p67 = scmp.eq.s32.totalorder %s20, 0
    %p68 = por %p66, %p67
    %s70 = sadd.s32 %s69, 1
    %p73 = scmp.eq.s32.totalorder %s14, 1
    %p74 = scmp.ne.s32.totalorder %s69, %s71
    %p75 = scmp.eq.s32.totalorder %s14, 0
    %p76 = por %p74, %p75
    %p77 = scmp.ne.s32.totalorder %s69, %s71
    %p78 = scmp.eq.s32.totalorder %s19, 1
    %p79 = por %p77, %p78
    %p80 = scmp.ne.s32.totalorder %s71, %s72
    %p81 = scmp.eq.s32.totalorder %s19, 0
    %p82 = por %p80, %p81
    %p83 = scmp.ne.s32.totalorder %s71, %s72
    %p84 = scmp.eq.s32.totalorder %s20, 1
    %p85 = por %p83, %p84
    %p87 = scmp.ne.s32.totalorder %s72, %s86
    %p88 = scmp.eq.s32.totalorder %s20, 0
    %p89 = por %p87, %p88
    %s91 = sadd.s32 %s90, 1
    %p94 = scmp.eq.s32.totalorder %s14, 1
    %p95 = scmp.ne.s32.totalorder %s90, %s92
    %p96 = scmp.eq.s32.totalorder %s14, 0
    %p97 = por %p95, %p96
    %p98 = scmp.ne.s32.totalorder %s90, %s92
    %p99 = scmp.eq.s32.totalorder %s19, 1
    %p100 = por %p98, %p99
    %p101 = scmp.ne.s32.totalorder %s92, %s93
    %p102 = scmp.eq.s32.totalorder %s19, 0
    %p103 = por %p101, %p102
    %p104 = scmp.ne.s32.totalorder %s92, %s93
    %p105 = scmp.eq.s32.totalorder %s20, 1
    %p106 = por %p104, %p105
    %p108 = scmp.ne.s32.totalorder %s93, %s107
    %p109 = scmp.eq.s32.totalorder %s20, 0
    %p110 = por %p108, %p109
    %s112 = sadd.s32 %s111, 1
    %p115 = scmp.eq.s32.totalorder %s14, 1
    %p116 = scmp.ne.s32.totalorder %s111, %s113
    %p117 = scmp.eq.s32.totalorder %s14, 0
    %p118 = por %p116, %p117
    %p119 = scmp.ne.s32.totalorder %s111, %s113
    %p120 = scmp.eq.s32.totalorder %s19, 1
    %p121 = por %p119, %p120
    %p122 = scmp.ne.s32.totalorder %s113, %s114
    %p123 = scmp.eq.s32.totalorder %s19, 0
    %p124 = por %p122, %p123
    %p125 = scmp.ne.s32.totalorder %s113, %s114
    %p126 = scmp.eq.s32.totalorder %s20, 1
    %p127 = por %p125, %p126
    %p129 = scmp.ne.s32.totalorder %s114, %s128
    %p130 = scmp.eq.s32.totalorder %s20, 0
    %p131 = por %p129, %p130
    %s133 = sadd.s32 %s132, 1
    %p136 = scmp.eq.s32.totalorder %s14, 1
    %p137 = scmp.ne.s32.totalorder %s132, %s134
    %p138 = scmp.eq.s32.totalorder %s14, 0
    %p139 = por %p137, %p138
    %p140 = scmp.ne.s32.totalorder %s132, %s134
    %p141 = scmp.eq.s32.totalorder %s19, 1
    %p142 = por %p140, %p141
    %p143 = scmp.ne.s32.totalorder %s134, %s135
    %p144 = scmp.eq.s32.totalorder %s19, 0
    %p145 = por %p143, %p144
    %p146 = scmp.ne.s32.totalorder %s134, %s135
    %p147 = scmp.eq.s32.totalorder %s20, 1
    %p148 = por %p146, %p147
    %p150 = scmp.ne.s32.totalorder %s135, %s149
    %p151 = scmp.eq.s32.totalorder %s20, 0
    %p152 = por %p150, %p151
    %s154 = sadd.s32 %s153, 1
    %p157 = scmp.eq.s32.totalorder %s14, 1
    %p158 = scmp.ne.s32.totalorder %s153, %s155
    %p159 = scmp.eq.s32.totalorder %s14, 0
    %p160 = por %p158, %p159
    %p161 = scmp.ne.s32.totalorder %s153, %s155
    %p162 = scmp.eq.s32.totalorder %s19, 1
    %p163 = por %p161, %p162
    %p164 = scmp.ne.s32.totalorder %s155, %s156
    %p165 = scmp.eq.s32.totalorder %s19, 0
    %p166 = por %p164, %p165
    %p167 = scmp.ne.s32.totalorder %s155, %s156
    %p168 = scmp.eq.s32.totalorder %s20, 1
    %p169 = por %p167, %p168
    %p171 = scmp.ne.s32.totalorder %s156, %s170
    %p172 = scmp.eq.s32.totalorder %s20, 0
    %p173 = por %p171, %p172
    %s175 = sadd.s32 %s174, 1
    %p178 = scmp.eq.s32.totalorder %s14, 1
    %p179 = scmp.ne.s32.totalorder %s174, %s176
    %p180 = scmp.eq.s32.totalorder %s14, 0
    %p181 = por %p179, %p180
    %p182 = scmp.ne.s32.totalorder %s174, %s176
    %p183 = scmp.eq.s32.totalorder %s19, 1
    %p184 = por %p182, %p183
    %p185 = scmp.ne.s32.totalorder %s176, %s177
    %p186 = scmp.eq.s32.totalorder %s19, 0
    %p187 = por %p185, %p186
    %p188 = scmp.ne.s32.totalorder %s176, %s177
    %p189 = scmp.eq.s32.totalorder %s20, 1
    %p190 = por %p188, %p189
    %p192 = scmp.ne.s32.totalorder %s177, %s191
    %p193 = scmp.eq.s32.totalorder %s20, 0
    %p194 = por %p192, %p193
    %s195 = ssub.s32 %s14, %s21
    %p196 = scmp.eq.s32.totalorder %s195, 0
    %s198 = sadd.s32 %s197, 1
    %s199 = scalar_select %p196, %s197, %s198
    %p202 = pneg %p196
    %p203 = scmp.eq.s32.totalorder %s14, 1
    %p204 = por %p202, %p203
    %p205 = scmp.ne.s32.totalorder %s197, %s200
    %p206 = scmp.eq.s32.totalorder %s14, 0
    %p207 = por %p205, %p206
    %p208 = scmp.ne.s32.totalorder %s197, %s200
    %p209 = scmp.eq.s32.totalorder %s19, 1
    %p210 = por %p208, %p209
    %p211 = scmp.ne.s32.totalorder %s200, %s201
    %p212 = scmp.eq.s32.totalorder %s19, 0
    %p213 = por %p211, %p212
    %p214 = scmp.ne.s32.totalorder %s200, %s201
    %p215 = scmp.eq.s32.totalorder %s20, 1
    %p216 = por %p214, %p215
    %p218 = scmp.ne.s32.totalorder %s201, %s217
    %p219 = scmp.eq.s32.totalorder %s20, 0
    %p220 = por %p218, %p219
    %p221 = scmp.le.s32.totalorder 1, %s14
    %p222 = scmp.lt.s32.totalorder %s14, 3
    %p223 = pnand %p221, %p222
    %p224 = pneg %p223
    // Predicated region
    $region9: #{double_conv_forward.1} parent=5 // pred_check
      _
    $region10: #{double_conv_forward.1} parent=5 // pred_check_branch
      %226 = sbr.rel (%p223) target = $region12
    $region11: #{double_conv_forward.1} parent=5 // pred_region
      %s227 = ssub.s32 %s14, 1
      // Predicated region
      $region13: #{double_conv_forward.1} parent=11 // pred_check
        %p228 = pneg %p61
      $region14: #{double_conv_forward.1} parent=11 // pred_check_branch
        %230 = sbr.rel (%p228) target = $region16
      $region15: #{double_conv_forward.1} parent=11 // pred_region
        _
      $region16: #{double_conv_forward.1} parent=11 // pred_fallthru
        _
      // Predicated region
      $region17: #{double_conv_forward.1} parent=11 // pred_check
        %p231 = pneg %p82
      $region18: #{double_conv_forward.1} parent=11 // pred_check_branch
        %233 = sbr.rel (%p231) target = $region20
      $region19: #{double_conv_forward.1} parent=11 // pred_region
        _
      $region20: #{double_conv_forward.1} parent=11 // pred_fallthru
        _
      // Predicated region
      $region21: #{double_conv_forward.1} parent=11 // pred_check
        %p234 = pneg %p103
      $region22: #{double_conv_forward.1} parent=11 // pred_check_branch
        %236 = sbr.rel (%p234) target = $region24
      $region23: #{double_conv_forward.1} parent=11 // pred_region
        _
      $region24: #{double_conv_forward.1} parent=11 // pred_fallthru
        _
      // Predicated region
      $region25: #{double_conv_forward.1} parent=11 // pred_check
        %p237 = pneg %p124
      $region26: #{double_conv_forward.1} parent=11 // pred_check_branch
        %239 = sbr.rel (%p237) target = $region28
      $region27: #{double_conv_forward.1} parent=11 // pred_region
        _
      $region28: #{double_conv_forward.1} parent=11 // pred_fallthru
        _
      // Predicated region
      $region29: #{double_conv_forward.1} parent=11 // pred_check
        %p240 = pneg %p145
      $region30: #{double_conv_forward.1} parent=11 // pred_check_branch
        %242 = sbr.rel (%p240) target = $region32
      $region31: #{double_conv_forward.1} parent=11 // pred_region
        _
      $region32: #{double_conv_forward.1} parent=11 // pred_fallthru
        _
      // Predicated region
      $region33: #{double_conv_forward.1} parent=11 // pred_check
        %p243 = pneg %p166
      $region34: #{double_conv_forward.1} parent=11 // pred_check_branch
        %245 = sbr.rel (%p243) target = $region36
      $region35: #{double_conv_forward.1} parent=11 // pred_region
        _
      $region36: #{double_conv_forward.1} parent=11 // pred_fallthru
        _
      // Predicated region
      $region37: #{double_conv_forward.1} parent=11 // pred_check
        %p246 = pneg %p187
      $region38: #{double_conv_forward.1} parent=11 // pred_check_branch
        %248 = sbr.rel (%p246) target = $region40
      $region39: #{double_conv_forward.1} parent=11 // pred_region
        _
      $region40: #{double_conv_forward.1} parent=11 // pred_fallthru
        _
    $region12: #{double_conv_forward.1} parent=5 // pred_fallthru
      _
    %p249 = scmp.lt.s32.totalorder %s14, 2
    // Predicated region
    $region41: #{double_conv_forward.1} parent=5 // pred_check
      %p250 = pneg %p249
    $region42: #{double_conv_forward.1} parent=5 // pred_check_branch
      %252 = sbr.rel (%p250) target = $region44
    $region43: #{double_conv_forward.1} parent=5 // pred_region
      // Predicated region
      $region45: #{double_conv_forward.1} parent=43 // pred_check
        %p253 = pneg %p34
      $region46: #{double_conv_forward.1} parent=43 // pred_check_branch
        %255 = sbr.rel (%p253) target = $region48
      $region47: #{double_conv_forward.1} parent=43 // pred_region
        %p256 = scmp.lt.s32.totalorder %s14, 1
        %s257 = scalar_select %p256, %s14, 1
        %s258 = smul.addr %s257, 2
        %s259 = smul.addr %s258, 4
        %s260 = scalar_lea.vmem %s0, %s259
      $region48: #{double_conv_forward.1} parent=43 // pred_fallthru
        _
    $region44: #{double_conv_forward.1} parent=5 // pred_fallthru
      _
    %p261 = scmp.le.s32.totalorder 1, %s14
    %p262 = scmp.lt.s32.totalorder %s14, 3
    %p263 = pnand %p261, %p262
    %p264 = pneg %p263
    // Predicated region
    $region49: #{double_conv_forward.1} parent=5 // pred_check
      _
    $region50: #{double_conv_forward.1} parent=5 // pred_check_branch
      %266 = sbr.rel (%p263) target = $region52
    $region51: #{double_conv_forward.1} parent=5 // pred_region
      %s267 = ssub.s32 %s14, 1
      %p268 = scmp.lt.s32.totalorder %s19, 1
      %s269 = scalar_select %p268, %s19, 1
      %s270 = smul.addr %s269, 2
      %s271 = smul.addr %s270, 4
      %s272 = scalar_lea.vmem %s0, %s271
      %p273 = pneg %p40
      %p274 = pneg %p37
      %p275 = pneg %p61
      %p276 = pneg %p58
      %p277 = pneg %p82
      %p278 = pneg %p79
      %p279 = pneg %p103
      %p280 = pneg %p100
      %p281 = pneg %p124
      %p282 = pneg %p121
      %p283 = pneg %p145
      %p284 = pneg %p142
      %p285 = pneg %p166
      %p286 = pneg %p163
      %p287 = pneg %p187
      %p288 = pneg %p184
      %p289 = pneg %p213
      %p290 = pneg %p210
      %p291 = scmp.lt.s32.totalorder %s19, 1
      %s292 = scalar_select %p291, %s19, 1
      %s293 = smul.addr %s292, 2
      %s294 = smul.addr %s293, 8
      %s295 = scalar_lea.vmem %s8, %s294
      %p296 = scmp.lt.s32.totalorder %s19, 1
      %s297 = scalar_select %p296, %s19, 1
      %s298 = smul.addr %s297, 2
      %s299 = smul.addr %s298, 4
      %s300 = scalar_lea.vmem %s0, %s299
      %p301 = scmp.lt.s32.totalorder %s19, 1
      %s302 = scalar_select %p301, %s19, 1
      %s303 = smul.addr %s302, 2
      %s304 = smul.addr %s303, 8
      %s305 = scalar_lea.vmem %s8, %s304
      %v306 = vld [vmem:[%s1] sm:$0x3]
      %v307 = vld [vmem:[%s1 + $0x2] sm:$0x3]
      %v308 = vld [vmem:[%s1 + $0x4] sm:$0x3]
      %v309 = vld [vmem:[%s1 + $0x6] sm:$0x3]
      %v310 = vld [vmem:[%s1 + $0xa] sm:$0x3]
      %v311 = vld [vmem:[%s1 + $0xc] sm:$0x3]
      %v312 = vld [vmem:[%s1 + $0xe] sm:$0x3]
      %v313 = vld [vmem:[%s1 + $0x10] sm:$0x3]
      %v314 = vld [vmem:[%s300] sm:$0xff]
      %v316 = vcombine.high %v314, %v314
      %317 = vrot.lane.b32.xlu0 %v316, 17
      %v318 = vpop.permute.xlu0 %317
      %320 = vrot.lane.b32.xlu0 %v314, 17
      %v321 = vpop.permute.xlu0 %320
      %vm322 = vcmask 138240
      %v323 = vsel %vm322, %v321, %v318
      %v326 = vsel %vm322, %v318, %v321
      %v328 = vlaneseq
      %v329 = vshrl.u32 %v328, 7
      %v330 = vsub.s32 0, %v329
      %v331 = vrot.slane %v306, %v330
      %v332 = vlaneseq
      %v333 = vshrl.u32 %v332, 7
      %v334 = vsub.s32 1, %v333
      %v335 = vrot.slane %v306, %v334
      %v338 = vmul.f32 %v326, %v331
      %v339 = vmul.f32 %v323, %v335
      %340 = vrot.lane.b32.xlu0 %v316, 16
      %v341 = vpop.permute.xlu0 %340
      %343 = vrot.lane.b32.xlu0 %v314, 16
      %v344 = vpop.permute.xlu0 %343
      %vm345 = vcmask 130048
      %v346 = vsel %vm345, %v344, %v341
      %v349 = vsel %vm345, %v341, %v344
      %v351 = vlaneseq
      %v352 = vshrl.u32 %v351, 7
      %v353 = vsub.s32 0, %v352
      %v354 = vrot.slane %v307, %v353
      %v355 = vlaneseq
      %v356 = vshrl.u32 %v355, 7
      %v357 = vsub.s32 1, %v356
      %v358 = vrot.slane %v307, %v357
      %v361 = vmul.f32 %v349, %v354
      %v362 = vmul.f32 %v346, %v358
      %363 = vrot.lane.b32.xlu0 %v316, 15
      %v364 = vpop.permute.xlu0 %363
      %366 = vrot.lane.b32.xlu0 %v314, 15
      %v367 = vpop.permute.xlu0 %366
      %vm368 = vcmask 121856
      %v369 = vsel %vm368, %v367, %v364
      %v372 = vsel %vm368, %v364, %v367
      %v374 = vlaneseq
      %v375 = vshrl.u32 %v374, 7
      %v376 = vsub.s32 0, %v375
      %v377 = vrot.slane %v308, %v376
      %v378 = vlaneseq
      %v379 = vshrl.u32 %v378, 7
      %v380 = vsub.s32 1, %v379
      %v381 = vrot.slane %v308, %v380
      %v384 = vmul.f32 %v372, %v377
      %v385 = vmul.f32 %v369, %v381
      %386 = vrot.lane.b32.xlu0 %v316, 1
      %v387 = vpop.permute.xlu0 %386
      %389 = vrot.lane.b32.xlu0 %v314, 1
      %v390 = vpop.permute.xlu0 %389
      %vm391 = vcmask 7168
      %v392 = vsel %vm391, %v390, %v387
      %v395 = vsel %vm391, %v387, %v390
      %v397 = vlaneseq
      %v398 = vshrl.u32 %v397, 7
      %v399 = vsub.s32 0, %v398
      %v400 = vrot.slane %v309, %v399
      %v401 = vlaneseq
      %v402 = vshrl.u32 %v401, 7
      %v403 = vsub.s32 1, %v402
      %v404 = vrot.slane %v309, %v403
      %v407 = vmul.f32 %v395, %v400
      %v408 = vmul.f32 %v392, %v404
      %409 = vrot.lane.b32.xlu0 %v314, 127
      %v410 = vpop.permute.xlu0 %409
      %411 = vrot.lane.b32.xlu0 %v316, 127
      %v412 = vpop.permute.xlu0 %411
      %vm413 = vcmask 1039360
      %v414 = vsel %vm413, %v410, %v412
      %v418 = vsel %vm413, %v412, %v410
      %v420 = vlaneseq
      %v421 = vshrl.u32 %v420, 7
      %v422 = vsub.s32 0, %v421
      %v423 = vrot.slane %v310, %v422
      %v424 = vlaneseq
      %v425 = vshrl.u32 %v424, 7
      %v426 = vsub.s32 1, %v425
      %v427 = vrot.slane %v310, %v426
      %v430 = vmul.f32 %v414, %v423
      %v431 = vmul.f32 %v418, %v427
      %432 = vrot.lane.b32.xlu0 %v314, 113
      %v433 = vpop.permute.xlu0 %432
      %434 = vrot.lane.b32.xlu0 %v316, 113
      %v435 = vpop.permute.xlu0 %434
      %vm436 = vcmask 924672
      %v437 = vsel %vm436, %v433, %v435
      %v441 = vsel %vm436, %v435, %v433
      %v443 = vlaneseq
      %v444 = vshrl.u32 %v443, 7
      %v445 = vsub.s32 0, %v444
      %v446 = vrot.slane %v311, %v445
      %v447 = vlaneseq
      %v448 = vshrl.u32 %v447, 7
      %v449 = vsub.s32 1, %v448
      %v450 = vrot.slane %v311, %v449
      %v453 = vmul.f32 %v437, %v446
      %v454 = vmul.f32 %v441, %v450
      %455 = vrot.lane.b32.xlu0 %v314, 112
      %v456 = vpop.permute.xlu0 %455
      %457 = vrot.lane.b32.xlu0 %v316, 112
      %v458 = vpop.permute.xlu0 %457
      %vm459 = vcmask 916480
      %v460 = vsel %vm459, %v456, %v458
      %v464 = vsel %vm459, %v458, %v456
      %v466 = vlaneseq
      %v467 = vshrl.u32 %v466, 7
      %v468 = vsub.s32 0, %v467
      %v469 = vrot.slane %v312, %v468
      %v470 = vlaneseq
      %v471 = vshrl.u32 %v470, 7
      %v472 = vsub.s32 1, %v471
      %v473 = vrot.slane %v312, %v472
      %v476 = vmul.f32 %v460, %v469
      %v477 = vmul.f32 %v464, %v473
      %478 = vrot.lane.b32.xlu0 %v314, 111
      %v479 = vpop.permute.xlu0 %478
      %480 = vrot.lane.b32.xlu0 %v316, 111
      %v481 = vpop.permute.xlu0 %480
      %vm482 = vcmask 908288
      %v483 = vsel %vm482, %v479, %v481
      %v487 = vsel %vm482, %v481, %v479
      %v489 = vlaneseq
      %v490 = vshrl.u32 %v489, 7
      %v491 = vsub.s32 0, %v490
      %v492 = vrot.slane %v313, %v491
      %v493 = vlaneseq
      %v494 = vshrl.u32 %v493, 7
      %v495 = vsub.s32 1, %v494
      %v496 = vrot.slane %v313, %v495
      %v499 = vmul.f32 %v483, %v492
      %v500 = vmul.f32 %v487, %v496
      %v503 = vrot.slane %v361, 4
      %v504 = vrot.slane %v362, 4
      %v509 = vrot.slane %v407, 4
      %v510 = vrot.slane %v408, 4
      %v516 = vrot.slane %v430, 4
      %v517 = vrot.slane %v431, 4
      %v522 = vrot.slane %v476, 4
      %v523 = vrot.slane %v477, 4
      %vm526 = vcmask 1043456
      %v527 = vsel %vm526, %v338, %v503
      %v528 = vsel %vm526, %v339, %v504
      %v529 = vsel %vm526, %v384, %v509
      %v530 = vsel %vm526, %v385, %v510
      %v531 = vsel %vm526, %v314, %v516
      %v532 = vsel %vm526, %v316, %v517
      %v533 = vsel %vm526, %v453, %v522
      %v534 = vsel %vm526, %v454, %v523
      %v535 = vld [vmem:[%s2] sm:$0xff]
      %vm536 = vcmask 293888
      %v538 = vsel %vm536, %v535, 0
      %v541 = vsel %vm526, %v499, 0
      %v544 = vsel %vm526, %v500, 0
      %546 = vmatprep.subr.mxu0 %v528
      %547 = vmatpush1.msra.mxu0 %v527
      %548 = vmatprep.subr.mxu0 %v530
      %549 = vmatpush1.msra.mxu0 %v529
      %550 = vmatprep.subr.mxu0 %v532
      %551 = vmatpush1.msra.mxu0 %v531
      %552 = vmatprep.subr.mxu0 %v534
      %553 = vmatpush1.msra.mxu0 %v533
      %554 = vmatprep.subr.mxu0 %v544
      %555 = vmatpush1.msra.mxu0 %v541
      %556 = vmatprep.subr.mxu0 0.0
      %557 = vmatpush1.msra.mxu0 0.0
      %558 = vmatprep.subr.mxu0 0.0
      %559 = vmatpush1.msra.mxu0 0.0
      %560 = vmatprep.subr.mxu0 0.0
      %561 = vmatpush1.msra.mxu0 0.0
      %562 = vmatprep.subr.mxu0 0.0
      %563 = vmatpush1.msra.mxu0 0.0
      %564 = vmatprep.subr.mxu0 0.0
      %565 = vmatpush1.msra.mxu0 0.0
      %566 = vmatprep.subr.mxu0 0.0
      %567 = vmatpush1.msra.mxu0 0.0
      %568 = vmatprep.subr.mxu0 0.0
      %569 = vmatpush1.msra.mxu0 0.0
      %570 = vmatprep.subr.mxu0 0.0
      %571 = vmatpush1.msra.mxu0 0.0
      %572 = vmatprep.subr.mxu0 0.0
      %573 = vmatpush1.msra.mxu0 0.0
      %574 = vmatprep.subr.mxu0 0.0
      %575 = vmatpush1.msra.mxu0 0.0
      %576 = vmatprep.subr.mxu0 0.0
      %577 = vmatpush1.msra.mxu0 0.0
      %578 = vmatprep.subr.mxu0 0.0
      %579 = vmatpush1.msra.mxu0 0.0
      %580 = vmatprep.subr.mxu0 0.0
      %581 = vmatpush1.msra.mxu0 0.0
      %582 = vmatprep.subr.mxu0 0.0
      %583 = vmatpush1.msra.mxu0 0.0
      %584 = vmatprep.subr.mxu0 0.0
      %585 = vmatpush1.msra.mxu0 0.0
      %586 = vmatprep.subr.mxu0 0.0
      %587 = vmatpush1.msra.mxu0 0.0
      %588 = vmatprep.subr.mxu0 0.0
      %589 = vmatpush1.msra.mxu0 0.0
      %590 = vmatprep.subr.mxu0 0.0
      %591 = vmatpush1.msra.mxu0 0.0
      %592 = vmatprep.subr.mxu0 0.0
      %593 = vmatpush1.msra.mxu0 0.0
      %594 = vmatprep.subr.mxu0 0.0
      %595 = vmatpush1.msra.mxu0 0.0
      %596 = vmatprep.subr.mxu0 0.0
      %597 = vmatpush1.msra.mxu0 0.0
      %598 = vmatprep.subr.mxu0 0.0
      %599 = vmatpush1.msra.mxu0 0.0
      %600 = vmatprep.subr.mxu0 0.0
      %601 = vmatpush1.msra.mxu0 0.0
      %602 = vmatprep.subr.mxu0 0.0
      %603 = vmatpush1.msra.mxu0 0.0
      %604 = vmatprep.subr.mxu0 0.0
      %605 = vmatpush1.msra.mxu0 0.0
      %606 = vmatprep.subr.mxu0 0.0
      %607 = vmatpush1.msra.mxu0 0.0
      %608 = vmatprep.subr.mxu0 0.0
      %609 = vmatpush1.msra.mxu0 0.0
      %610 = vmatprep.mubr.f32.mxu0 0.0
      %611 = vmatmul.mubr.f32.gmra.mrb[0].mxu0 %v538
      %v612 = vpop.f32.mrb[0].mxu0
      %v613 = vadd.f32 0.0, %v612
      %v614 = vpop.f32.mrb[0].mxu0
      %v615 = vadd.f32 0.0, %v614
      %616 = vdwg.mxu0
      %v617 = vadd.f32 %v613, %v615
      %618 = vadd.xlane.f32.xlu0 %v617
      %v619 = vpop.xlane.xlu0 %618
      %v620 = vrot.slane %v619, 4
      %v621 = vadd.f32 %v619, %v620
      %v622 = vrot.slane %v621, 2
      %v623 = vadd.f32 %v621, %v622
      %v624 = vrot.slane %v623, 1
      %v625 = vadd.f32 %v623, %v624
      %s626 = vtos %v625
      %v627 = vmul.f32 %v613, %v613
      %v628 = vmul.f32 %v615, %v615
      %v629 = vadd.f32 %v627, %v628
      %630 = vadd.xlane.f32.xlu0 %v629
      %v631 = vpop.xlane.xlu0 %630
      %v632 = vrot.slane %v631, 4
      %v633 = vadd.f32 %v631, %v632
      %v634 = vrot.slane %v633, 2
      %v635 = vadd.f32 %v633, %v634
      %v636 = vrot.slane %v635, 1
      %v637 = vadd.f32 %v635, %v636
      %s638 = vtos %v637
      %s639 = smul.f32 %s626, 0.00048828125
      %s640 = smul.f32 %s638, 0.00048828125
      %s641 = smul.f32 %s639, %s639
      %s642 = ssub.f32 %s640, %s641
      %s643 = sadd.f32 %s642, 1e-05
      %v644 = vstv %s643
      %v645 = vrsqrt.pop %v644
      %s646 = vtos %v645
      %v647 = vld [vmem:[%s3] sm:$0xff]
      %v648 = vstv %s646
      %v649 = vmul.f32 %v648, %v647
      %v650 = vld [vmem:[%s4] sm:$0xff]
      %v651 = vstv %s639
      %v652 = vmul.f32 %v651, %v649
      %v653 = vsub.f32 %v650, %v652
      %655 = vset.pattern.permute.xlu0 0
      %656 = vperm.xlu0 %655, %v649
      %v657 = vpop.permute.xlu0 %656
      %v659 = vmul.f32 %v613, %v657
      %v660 = vmul.f32 %v615, %v657
      %662 = vset.pattern.permute.xlu0 0
      %663 = vperm.xlu0 %662, %v653
      %v664 = vpop.permute.xlu0 %663
      %v666 = vadd.f32 %v659, %v664
      %v667 = vadd.f32 %v660, %v664
      %v668 = vmul.f32 %v666, 0.5
      %v669 = vmul.f32 %v667, 0.5
      %v670 = vmul.f32 %v666, 0.70710677
      %v671 = vmul.f32 %v667, 0.70710677
      %vm672 = vcmp.ge.f32.partialorder %v670, 0.0
      %vm673 = vcmp.ge.f32.partialorder %v671, 0.0
      %v674 = vsel %vm672, 1.0, -1.0
      %v675 = vsel %vm673, 1.0, -1.0
      %v676 = vand.u32 2147483647, %v670
      %v677 = vand.u32 2147483647, %v671
      %v678 = vmul.f32 %v676, 0.3275911
      %v679 = vmul.f32 %v677, 0.3275911
      %v680 = vadd.f32 %v678, 1.0
      %v681 = vadd.f32 %v679, 1.0
      %v682 = vrcp.pop %v680
      %v683 = vmul.f32 1.0, %v682
      %v684 = vrcp.pop %v681
      %v685 = vmul.f32 1.0, %v684
      %v686 = vmul.f32 %v683, 1.0614054
      %v687 = vmul.f32 %v685, 1.0614054
      %v688 = vadd.f32 %v686, -1.4531521
      %v689 = vadd.f32 %v687, -1.4531521
      %v690 = vmul.f32 %v688, %v683
      %v691 = vmul.f32 %v689, %v685
      %v692 = vadd.f32 %v690, 1.4214138
      %v693 = vadd.f32 %v691, 1.4214138
      %v694 = vmul.f32 %v692, %v683
      %v695 = vmul.f32 %v693, %v685
      %v696 = vadd.f32 %v694, -0.28449672
      %v697 = vadd.f32 %v695, -0.28449672
      %v698 = vmul.f32 %v696, %v683
      %v699 = vmul.f32 %v697, %v685
      %v700 = vadd.f32 %v698, 0.2548296
      %v701 = vadd.f32 %v699, 0.2548296
      %v702 = vmul.f32 %v700, %v683
      %v703 = vmul.f32 %v701, %v685
      %v704 = vsub.f32 0.0, %v676
      %v705 = vsub.f32 0.0, %v677
      %v706 = vmul.f32 %v704, %v676
      %v707 = vmul.f32 %v705, %v677
      %v708 = vmul.f32 %v706, 1.442695
      %v709 = vpow.pop %v708
      %v710 = vmul.f32 %v707, 1.442695
      %v711 = vpow.pop %v710
      %v712 = vmul.f32 %v702, %v709
      %v713 = vmul.f32 %v703, %v711
      %v714 = vsub.f32 1.0, %v712
      %v715 = vsub.f32 1.0, %v713
      %v716 = vmul.f32 %v674, %v714
      %v717 = vmul.f32 %v675, %v715
      %v718 = vadd.f32 %v716, 1.0
      %v719 = vadd.f32 %v717, 1.0
      %v720 = vmul.f32 %v668, %v718
      %v721 = vmul.f32 %v669, %v719
      %723 = vrot.lane.b32.xlu0 %v721, 17
      %v724 = vpop.permute.xlu0 %723
      %727 = vrot.lane.b32.xlu0 %v720, 17
      %v728 = vpop.permute.xlu0 %727
      %v729 = vsel %vm322, %v728, %v724
      %v732 = vsel %vm322, %v724, %v728
      %v733 = vmul.f32 %v732, %v331
      %v734 = vmul.f32 %v729, %v335
      %735 = vrot.lane.b32.xlu0 %v721, 16
      %v736 = vpop.permute.xlu0 %735
      %738 = vrot.lane.b32.xlu0 %v720, 16
      %v739 = vpop.permute.xlu0 %738
      %v740 = vsel %vm345, %v739, %v736
      %v743 = vsel %vm345, %v736, %v739
      %v744 = vmul.f32 %v743, %v354
      %v745 = vmul.f32 %v740, %v358
      %746 = vrot.lane.b32.xlu0 %v721, 15
      %v747 = vpop.permute.xlu0 %746
      %749 = vrot.lane.b32.xlu0 %v720, 15
      %v750 = vpop.permute.xlu0 %749
      %v751 = vsel %vm368, %v750, %v747
      %v754 = vsel %vm368, %v747, %v750
      %v755 = vmul.f32 %v754, %v377
      %v756 = vmul.f32 %v751, %v381
      %757 = vrot.lane.b32.xlu0 %v721, 1
      %v758 = vpop.permute.xlu0 %757
      %760 = vrot.lane.b32.xlu0 %v720, 1
      %v761 = vpop.permute.xlu0 %760
      %v762 = vsel %vm391, %v761, %v758
      %v765 = vsel %vm391, %v758, %v761
      %v766 = vmul.f32 %v765, %v400
      %v767 = vmul.f32 %v762, %v404
      %768 = vrot.lane.b32.xlu0 %v720, 127
      %v769 = vpop.permute.xlu0 %768
      %770 = vrot.lane.b32.xlu0 %v721, 127
      %v771 = vpop.permute.xlu0 %770
      %v772 = vsel %vm413, %v769, %v771
      %v776 = vsel %vm413, %v771, %v769
      %v777 = vmul.f32 %v772, %v423
      %v778 = vmul.f32 %v776, %v427
      %779 = vrot.lane.b32.xlu0 %v720, 113
      %v780 = vpop.permute.xlu0 %779
      %781 = vrot.lane.b32.xlu0 %v721, 113
      %v782 = vpop.permute.xlu0 %781
      %v783 = vsel %vm436, %v780, %v782
      %v787 = vsel %vm436, %v782, %v780
      %v788 = vmul.f32 %v783, %v446
      %v789 = vmul.f32 %v787, %v450
      %790 = vrot.lane.b32.xlu0 %v720, 112
      %v791 = vpop.permute.xlu0 %790
      %792 = vrot.lane.b32.xlu0 %v721, 112
      %v793 = vpop.permute.xlu0 %792
      %v794 = vsel %vm459, %v791, %v793
      %v798 = vsel %vm459, %v793, %v791
      %v799 = vmul.f32 %v794, %v469
      %v800 = vmul.f32 %v798, %v473
      %801 = vrot.lane.b32.xlu0 %v720, 111
      %v802 = vpop.permute.xlu0 %801
      %803 = vrot.lane.b32.xlu0 %v721, 111
      %v804 = vpop.permute.xlu0 %803
      %v805 = vsel %vm482, %v802, %v804
      %v809 = vsel %vm482, %v804, %v802
      %v810 = vmul.f32 %v805, %v492
      %v811 = vmul.f32 %v809, %v496
      %v812 = vld [vmem:[%s5] sm:$0xff]
      %vm813 = vcmask 588800
      %v815 = vsel %vm813, %v812, 0
      %817 = vmatprep.subr.mxu0 %v734
      %818 = vmatpush1.msra.mxu0 %v733
      %819 = vmatprep.subr.mxu0 %v745
      %820 = vmatpush1.msra.mxu0 %v744
      %821 = vmatprep.subr.mxu0 %v756
      %822 = vmatpush1.msra.mxu0 %v755
      %823 = vmatprep.subr.mxu0 %v767
      %824 = vmatpush1.msra.mxu0 %v766
      %825 = vmatprep.subr.mxu0 %v721
      %826 = vmatpush1.msra.mxu0 %v720
      %827 = vmatprep.subr.mxu0 %v778
      %828 = vmatpush1.msra.mxu0 %v777
      %829 = vmatprep.subr.mxu0 %v789
      %830 = vmatpush1.msra.mxu0 %v788
      %831 = vmatprep.subr.mxu0 %v800
      %832 = vmatpush1.msra.mxu0 %v799
      %833 = vmatprep.subr.mxu0 %v811
      %834 = vmatpush1.msra.mxu0 %v810
      %835 = vmatprep.subr.mxu0 0.0
      %836 = vmatpush1.msra.mxu0 0.0
      %837 = vmatprep.subr.mxu0 0.0
      %838 = vmatpush1.msra.mxu0 0.0
      %839 = vmatprep.subr.mxu0 0.0
      %840 = vmatpush1.msra.mxu0 0.0
      %841 = vmatprep.subr.mxu0 0.0
      %842 = vmatpush1.msra.mxu0 0.0
      %843 = vmatprep.subr.mxu0 0.0
      %844 = vmatpush1.msra.mxu0 0.0
      %845 = vmatprep.subr.mxu0 0.0
      %846 = vmatpush1.msra.mxu0 0.0
      %847 = vmatprep.subr.mxu0 0.0
      %848 = vmatpush1.msra.mxu0 0.0
      %849 = vmatprep.subr.mxu0 0.0
      %850 = vmatpush1.msra.mxu0 0.0
      %851 = vmatprep.subr.mxu0 0.0
      %852 = vmatpush1.msra.mxu0 0.0
      %853 = vmatprep.subr.mxu0 0.0
      %854 = vmatpush1.msra.mxu0 0.0
      %855 = vmatprep.subr.mxu0 0.0
      %856 = vmatpush1.msra.mxu0 0.0
      %857 = vmatprep.subr.mxu0 0.0
      %858 = vmatpush1.msra.mxu0 0.0
      %859 = vmatprep.subr.mxu0 0.0
      %860 = vmatpush1.msra.mxu0 0.0
      %861 = vmatprep.subr.mxu0 0.0
      %862 = vmatpush1.msra.mxu0 0.0
      %863 = vmatprep.subr.mxu0 0.0
      %864 = vmatpush1.msra.mxu0 0.0
      %865 = vmatprep.subr.mxu0 0.0
      %866 = vmatpush1.msra.mxu0 0.0
      %867 = vmatprep.subr.mxu0 0.0
      %868 = vmatpush1.msra.mxu0 0.0
      %869 = vmatprep.subr.mxu0 0.0
      %870 = vmatpush1.msra.mxu0 0.0
      %871 = vmatprep.subr.mxu0 0.0
      %872 = vmatpush1.msra.mxu0 0.0
      %873 = vmatprep.subr.mxu0 0.0
      %874 = vmatpush1.msra.mxu0 0.0
      %875 = vmatprep.subr.mxu0 0.0
      %876 = vmatpush1.msra.mxu0 0.0
      %877 = vmatprep.subr.mxu0 0.0
      %878 = vmatpush1.msra.mxu0 0.0
      %879 = vmatprep.subr.mxu0 0.0
      %880 = vmatpush1.msra.mxu0 0.0
      %881 = vmatprep.mubr.f32.mxu0 0.0
      %882 = vmatmul.mubr.f32.gmra.mrb[0].mxu0 %v815
      %v883 = vpop.f32.mrb[0].mxu0
      %v884 = vadd.f32 0.0, %v883
      %v885 = vpop.f32.mrb[0].mxu0
      %v886 = vadd.f32 0.0, %v885
      %887 = vdwg.mxu0
      %v888 = vadd.f32 %v884, %v886
      %889 = vadd.xlane.f32.xlu0 %v888
      %v890 = vpop.xlane.xlu0 %889
      %v891 = vrot.slane %v890, 4
      %v892 = vadd.f32 %v890, %v891
      %v893 = vrot.slane %v892, 2
      %v894 = vadd.f32 %v892, %v893
      %v895 = vrot.slane %v894, 1
      %v896 = vadd.f32 %v894, %v895
      %s897 = vtos %v896
      %v898 = vmul.f32 %v884, %v884
      %v899 = vmul.f32 %v886, %v886
      %v900 = vadd.f32 %v898, %v899
      %901 = vadd.xlane.f32.xlu0 %v900
      %v902 = vpop.xlane.xlu0 %901
      %v903 = vrot.slane %v902, 4
      %v904 = vadd.f32 %v902, %v903
      %v905 = vrot.slane %v904, 2
      %v906 = vadd.f32 %v904, %v905
      %v907 = vrot.slane %v906, 1
      %v908 = vadd.f32 %v906, %v907
      %s909 = vtos %v908
      %s910 = smul.f32 %s897, 0.00048828125
      %s911 = smul.f32 %s909, 0.00048828125
      %s912 = smul.f32 %s910, %s910
      %s913 = ssub.f32 %s911, %s912
      %s914 = sadd.f32 %s913, 1e-05
      %v915 = vstv %s914
      %v916 = vrsqrt.pop %v915
      %s917 = vtos %v916
      %v918 = vld [vmem:[%s6] sm:$0xff]
      %v919 = vstv %s917
      %v920 = vmul.f32 %v919, %v918
      %v921 = vld [vmem:[%s7] sm:$0xff]
      %v922 = vstv %s910
      %v923 = vmul.f32 %v922, %v920
      %v924 = vsub.f32 %v921, %v923
      %926 = vset.pattern.permute.xlu0 0
      %927 = vperm.xlu0 %926, %v920
      %v928 = vpop.permute.xlu0 %927
      %v930 = vmul.f32 %v884, %v928
      %v931 = vmul.f32 %v886, %v928
      %933 = vset.pattern.permute.xlu0 0
      %934 = vperm.xlu0 %933, %v924
      %v935 = vpop.permute.xlu0 %934
      %v937 = vadd.f32 %v930, %v935
      %v938 = vadd.f32 %v931, %v935
      %939 = vst [vmem:[%s305] sm:$0xff] %v937
      %940 = vst [vmem:[%s305 + $0x8] sm:$0xff] %v938
      %p941 = scmp.lt.s32.totalorder %s19, 1
      %s942 = scalar_select %p941, %s19, 1
      %s943 = smul.addr %s942, 2
      %s944 = smul.addr %s943, 8
      %s945 = scalar_lea.vmem %s8, %s944
      // Predicated region
      $region53: #{double_conv_forward.1} parent=51 // pred_check
        %p946 = pneg %p210
      $region54: #{double_conv_forward.1} parent=51 // pred_check_branch
        %948 = sbr.rel (%p946) target = $region56
      $region55: #{double_conv_forward.1} parent=51 // pred_region
        _
      $region56: #{double_conv_forward.1} parent=51 // pred_fallthru
        _
    $region52: #{double_conv_forward.1} parent=5 // pred_fallthru
      _
    %p949 = scmp.le.s32.totalorder 2, %s14
    // Predicated region
    $region57: #{double_conv_forward.1} parent=5 // pred_check
      %p950 = pneg %p949
    $region58: #{double_conv_forward.1} parent=5 // pred_check_branch
      %952 = sbr.rel (%p950) target = $region60
    $region59: #{double_conv_forward.1} parent=5 // pred_region
      %s953 = ssub.s32 %s14, 2
      // Predicated region
      $region61: #{double_conv_forward.1} parent=59 // pred_check
        %p954 = pneg %p216
      $region62: #{double_conv_forward.1} parent=59 // pred_check_branch
        %956 = sbr.rel (%p954) target = $region64
      $region63: #{double_conv_forward.1} parent=59 // pred_region
        %p957 = scmp.lt.s32.totalorder %s20, 1
        %s958 = scalar_select %p957, %s20, 1
        %s959 = smul.addr %s958, 2
        %s960 = smul.addr %s959, 8
        %s961 = scalar_lea.vmem %s8, %s960
      $region64: #{double_conv_forward.1} parent=59 // pred_fallthru
        _
    $region60: #{double_conv_forward.1} parent=5 // pred_fallthru
      _
  $region6: #{double_conv_forward.1} parent=0 // loop_footer
    %s18 = sadd.s32 1, %s14
  $region7: #{double_conv_forward.1} parent=0 // loop_footer_branch
    %13 = sbr.rel target = $region3
  $region8: #{double_conv_forward.1} parent=0 // loop_exit
    _

</llo_original>
